<compile_context>
chip_gen: v5e
topology: v5e:2x2
jax: 0.10.0
libtpu: 0.0.40
codegen_flags: <defaults>
</compile_context>

<pallas_src>
import math

import jax
import jax.numpy as jnp
from jax.experimental import pallas as pl
from jax.experimental.pallas import tpu as pltpu


_SMALL_BYTES = 256 * 1024               # below this, XLA fusion wins outright
_TARGET_BLOCK_BYTES = 4 * 1024 * 1024   # ~4 MiB x block: amortizes ~0.35 us/step
_VMEM_LIMIT_BYTES = 48 * 1024 * 1024    # explicit scoped-VMEM; < v7x 64 MiB physical


# ------------------------------- kernel ------------------------------------ #
def _row_bias_kernel(x_ref, b_ref, o_ref):
    # x_ref: (TILE_R, TILE_K); b_ref: (1, TILE_K) -> sublane broadcast (free on VPU).
    o_ref[...] = x_ref[...] + b_ref[...]


# ---------------------------- tiling helpers ------------------------------- #
def _pick_tiles(R: int, K: int, itemsize: int):
    """Lane-dense tiles: full K if it fits the ~4 MiB budget, else a 128-aligned
    chunk; rows in multiples of 8 to fill the budget."""
    max_k = max(128, _TARGET_BLOCK_BYTES // (8 * itemsize))
    tile_k = K if K <= max_k else (max_k // 128) * 128
    max_r = max(8, (_TARGET_BLOCK_BYTES // max(1, tile_k * itemsize)) // 8 * 8)
    tile_r = R if R <= max_r else max_r
    return tile_r, tile_k


def _add_row_bias_pallas(x2d: jax.Array, b_row: jax.Array) -> jax.Array:
    """out[r, k] = x2d[r, k] + b_row[0, k], tiled over both axes."""
    R, K = x2d.shape
    itemsize = jnp.dtype(x2d.dtype).itemsize
    tile_r, tile_k = _pick_tiles(R, K, itemsize)
    grid = (pl.cdiv(R, tile_r), pl.cdiv(K, tile_k))

    return pl.pallas_call(
        _row_bias_kernel,
        out_shape=jax.ShapeDtypeStruct((R, K), x2d.dtype),
        grid_spec=pl.GridSpec(
            grid=grid,
            in_specs=[
                pl.BlockSpec((tile_r, tile_k), lambda i, j: (i, j)),
                pl.BlockSpec((1, tile_k), lambda i, j: (0, j)),
            ],
            out_specs=pl.BlockSpec((tile_r, tile_k), lambda i, j: (i, j)),
        ),
        compiler_params=pltpu.CompilerParams(
            dimension_semantics=("parallel", "parallel"),
            vmem_limit_bytes=_VMEM_LIMIT_BYTES,
        ),
        cost_estimate=pl.CostEstimate(
            flops=R * K,
            transcendentals=0,
            bytes_accessed=2 * R * K * itemsize + K * itemsize,
        ),
    )(x2d, b_row)


# ------------------------------- wrapper ------------------------------------ #
def add_bias(x: jax.Array, bias_param: jax.Array, *, force_pallas: bool = False):
    """Pallas equivalent of AddBias.forward; bias_param has shape (C, 1).

    Note: the add runs in x.dtype (bias is cast down once). This deviates from
    torch promotion for bf16 x + f32 Parameter (torch would return f32).
    """
    C = bias_param.shape[0]
    bias_vec = bias_param.reshape(C).astype(x.dtype)
    itemsize = jnp.dtype(x.dtype).itemsize
    total_bytes = x.size * itemsize

    if x.ndim == 2:
        N = x.shape[0]
        assert x.shape[1] == C
        if total_bytes < _SMALL_BYTES and not force_pallas:
            return x + bias_vec[None, :]                    # XLA fuses this for free
        if C % 128 != 0:
            # Lane-dense fold: (N, C) -> (N//k, k*C) with k*C a multiple of 128.
            k = 128 // math.gcd(C, 128)
            if k > 1 and N % k == 0:
                x2d = x.reshape(N // k, k * C)
                b_row = jnp.tile(bias_vec, (k,)).reshape(1, k * C)
                return _add_row_bias_pallas(x2d, b_row).reshape(N, C)
        return _add_row_bias_pallas(x, bias_vec.reshape(1, C))

    elif x.ndim == 4:
        N, Cx, H, W = x.shape
        assert Cx == C
        if total_bytes < _SMALL_BYTES and not force_pallas:
            return x + bias_vec.reshape(1, C, 1, 1)
        # Lane-dense layout: (N, C*H*W) with a precomputed bias row (sublane bcast).
        K = C * H * W
        x2d = x.reshape(N, K)
        b_row = jnp.broadcast_to(bias_vec[:, None], (C, H * W)).reshape(1, K)
        return _add_row_bias_pallas(x2d, b_row).reshape(N, C, H, W)

    raise ValueError(f"AddBias expects 2-D or 4-D input, got ndim={x.ndim}")


# --------------------------------- main -------------------------------------- #
if __name__ == "__main__":
    key = jax.random.PRNGKey(0)
    k_bias, k_x4, k_x2, k_big, k_fold = jax.random.split(key, 5)

    N, C, H, W = 2, 4, 16, 16

    # "Parameter": bias vector (C,), stored as (C, 1) like nn.Parameter(bias.unsqueeze(1)).
    bias_vec = jax.random.normal(k_bias, (C,), dtype=jnp.float32)
    bias_param = bias_vec[:, None]

    # 4-D path (NCHW), small demo shape, forced through the Pallas kernel.
    x4 = jax.random.normal(k_x4, (N, C, H, W), dtype=jnp.float32)
    y4 = jax.block_until_ready(add_bias(x4, bias_param, force_pallas=True))
    ref4 = x4 + bias_vec.reshape(1, C, 1, 1)
    assert y4.shape == (N, C, H, W)
    assert jnp.allclose(y4, ref4, atol=1e-6), "4-D AddBias (pallas) mismatch"

    # Same shape via the small-input fallback (plain XLA add).
    y4f = jax.block_until_ready(add_bias(x4, bias_param))
    assert jnp.allclose(y4f, ref4, atol=1e-6), "4-D AddBias (fallback) mismatch"

    # 2-D path, tiny, forced Pallas.
    x2 = jax.random.normal(k_x2, (N, C), dtype=jnp.float32)
    y2 = jax.block_until_ready(add_bias(x2, bias_param, force_pallas=True))
    assert jnp.allclose(y2, x2 + bias_vec[None, :], atol=1e-6), "2-D AddBias mismatch"

    # 2-D path, C multiple of 128, large enough to take the auto Pallas route.
    C_big = 512
    bias_big = jax.random.normal(k_bias, (C_big,), dtype=jnp.float32)
    x_big = jax.random.normal(k_big, (256, C_big), dtype=jnp.float32)
    y_big = jax.block_until_ready(add_bias(x_big, bias_big[:, None]))
    assert jnp.allclose(y_big, x_big + bias_big[None, :], atol=1e-6), "2-D big mismatch"

    # 2-D path, C=96 (not a multiple of 128) -> lane-dense fold with k=4.
    C_f = 96
    bias_f = jax.random.normal(k_fold, (C_f,), dtype=jnp.float32)
    x_f = jax.random.normal(k_fold, (64, C_f), dtype=jnp.float32)
    y_f = jax.block_until_ready(add_bias(x_f, bias_f[:, None], force_pallas=True))
    assert jnp.allclose(y_f, x_f + bias_f[None, :], atol=1e-6), "2-D fold mismatch"

    # bf16 x with f32 parameter: bias cast down in the wrapper, result stays bf16.
    x2_bf16 = x2.astype(jnp.bfloat16)
    y2_bf16 = jax.block_until_ready(add_bias(x2_bf16, bias_param, force_pallas=True))
    ref_bf16 = x2_bf16 + bias_vec.astype(jnp.bfloat16)[None, :]
    assert y2_bf16.dtype == jnp.bfloat16
    assert jnp.allclose(
        y2_bf16.astype(jnp.float32), ref_bf16.astype(jnp.float32), atol=1e-2
    ), "bf16 AddBias mismatch"

    print("KERNEL_OK")
</pallas_src>

<mosaic_0001>
module attributes {stable_mosaic.version = 11 : i64} {
  func.func @_row_bias_kernel(%arg0: i32, %arg1: i32, %arg2: memref<2x1024xf32, #tpu.memory_space<vmem>>, %arg3: memref<1x1024xf32, #tpu.memory_space<vmem>>, %arg4: memref<2x1024xf32, #tpu.memory_space<vmem>>) attributes {dimension_semantics = [#tpu.dimension_semantics<parallel>, #tpu.dimension_semantics<parallel>], iteration_bounds = array<i64: 1, 1>, scalar_prefetch = 0 : i64, scratch_operands = 0 : i64, tpu.core_type = #tpu.core_type<tc>, window_params = [{transform_indices = @transform_0, window_bounds = array<i64: 2, 1024>}, {transform_indices = @transform_1, window_bounds = array<i64: 1, 1024>}, {transform_indices = @transform_2, window_bounds = array<i64: 2, 1024>}]} {
    %c0 = arith.constant 0 : index
    %c0_0 = arith.constant 0 : index
    %0 = vector.load %arg2[%c0, %c0_0] : memref<2x1024xf32, #tpu.memory_space<vmem>>, vector<2x1024xf32>
    %c0_1 = arith.constant 0 : index
    %c0_2 = arith.constant 0 : index
    %1 = vector.load %arg3[%c0_1, %c0_2] : memref<1x1024xf32, #tpu.memory_space<vmem>>, vector<1x1024xf32>
    %2 = vector.broadcast %1 : vector<1x1024xf32> to vector<2x1024xf32>
    %3 = arith.addf %0, %2 : vector<2x1024xf32>
    %c0_3 = arith.constant 0 : index
    %c0_4 = arith.constant 0 : index
    %4 = vector.load %arg4[%c0_3, %c0_4] : memref<2x1024xf32, #tpu.memory_space<vmem>>, vector<2x1024xf32>
    tpu.vector_store %arg4[%c0_3, %c0_4], %3 {strides = array<i32>} : memref<2x1024xf32, #tpu.memory_space<vmem>>, vector<2x1024xf32>,
    return
  }
  func.func @transform_0(%arg0: i32, %arg1: i32) -> (i32, i32) {
    %c0_i32 = arith.constant 0 : i32
    return %arg0, %arg1 : i32, i32
  }
  func.func @transform_1(%arg0: i32, %arg1: i32) -> (i32, i32) {
    %c0_i32 = arith.constant 0 : i32
    %c0_i32_0 = arith.constant 0 : i32
    return %c0_i32, %arg1 : i32, i32
  }
  func.func @transform_2(%arg0: i32, %arg1: i32) -> (i32, i32) {
    %c0_i32 = arith.constant 0 : i32
    return %arg0, %arg1 : i32, i32
  }
}

</mosaic_0001>

<llo_original>
// kernel: tpu_custom_call.1
$region0: #{tpu_custom_call.1}
  #allocation0 [shape = 'u32[]', space=smem, size = 0x4, offset = 0x4, fixed_abs, tag = 'smem constant byte address 0x4 - core index']
  #allocation1 [shape = 'u32[72,128]{1,0:T(1,128)}', space=vmem, size = 0x9000, scoped, tag = 'internal scratch']
  %s0 = inlined_call_operand.hbm [shape: f32[2,1024], index: 0, kind: input, shape index: {}]
  %s1 = inlined_call_operand.hbm [shape: f32[1,1024], index: 1, kind: input, shape index: {}]
  %s2 = inlined_call_operand.hbm [shape: f32[2,1024], index: 2, kind: output, shape index: {}]
  %s3 = sld [smem:[#allocation0]]
  $region26: #{tpu_custom_call.1} parent=0
    _
  %s5 = ssub.s32 1, %s3
  %s6 = scalar_select 0, %s5, %s3
  $region1: #{tpu_custom_call.1} parent=0
    #allocation2 [shape = 'u8[8192]{0}', space=vmem, size = 0x2000, scoped, tag = 'input window, operand 0, single buffered']
    #allocation3 [shape = 's32[1]{0}', space=sflag, size = 0x4, scoped, tag = 'scoped memory for tpu_custom_call.1']
    #allocation4 [shape = 's32[1]{0}', space=sflag, size = 0x4, scoped, tag = 'scoped memory for tpu_custom_call.1']
    #allocation5 [shape = 'u8[4096]{0}', space=vmem, size = 0x1000, scoped, tag = 'input window, operand 1, single buffered']
    #allocation6 [shape = 's32[1]{0}', space=sflag, size = 0x4, scoped, tag = 'scoped memory for tpu_custom_call.1']
    #allocation7 [shape = 'u8[8192]{0}', space=vmem, size = 0x2000, scoped, tag = 'output window, operand 0, single buffered']
    %7 = vsyncpa [#allocation3], 0
    %8 = vsyncpa [#allocation6], 0
    %9 = vsyncpa [#allocation4], 0
    // Predicated region
    $region2: #{tpu_custom_call.1} parent=1 // pred_check
      _
    $region3: #{tpu_custom_call.1} parent=1 // pred_check_branch
      %11 = sbr.rel (0) target = $region5
    $region4: #{tpu_custom_call.1} parent=1 // pred_region
      %13 = vsyncadd [#allocation3], 0
      %s15 = sshll.u32 %s0, 4
      %s16 = int_to_ptr.hbm [resolvable:$true] %s15
      %s17 = sshll.u32 [#allocation2], 4
      %s18 = int_to_ptr.vmem [resolvable:$true] %s17
      %20 = dma.hbm_to_vmem [thread:$0]  %s16, 256, %s18, [#allocation3]
    $region5: #{tpu_custom_call.1} parent=1 // pred_fallthru
      _
    // Predicated region
    $region6: #{tpu_custom_call.1} parent=1 // pred_check
      _
    $region7: #{tpu_custom_call.1} parent=1 // pred_check_branch
      %22 = sbr.rel (0) target = $region9
    $region8: #{tpu_custom_call.1} parent=1 // pred_region
      %24 = vsyncadd [#allocation6], 0
      %s26 = sshll.u32 %s1, 4
      %s27 = int_to_ptr.hbm [resolvable:$true] %s26
      %s28 = sshll.u32 [#allocation5], 4
      %s29 = int_to_ptr.vmem [resolvable:$true] %s28
      %31 = dma.hbm_to_vmem [thread:$0]  %s27, 128, %s29, [#allocation6]
    $region9: #{tpu_custom_call.1} parent=1 // pred_fallthru
      _
    // Predicated region
    $region10: #{tpu_custom_call.1} parent=1 // pred_check
      _
    $region11: #{tpu_custom_call.1} parent=1 // pred_check_branch
      %33 = sbr.rel (0) target = $region13
    $region12: #{tpu_custom_call.1} parent=1 // pred_region
      %35 = dma.done [#allocation3], 256
    $region13: #{tpu_custom_call.1} parent=1 // pred_fallthru
      _
    // Predicated region
    $region14: #{tpu_custom_call.1} parent=1 // pred_check
      _
    $region15: #{tpu_custom_call.1} parent=1 // pred_check_branch
      %37 = sbr.rel (0) target = $region17
    $region16: #{tpu_custom_call.1} parent=1 // pred_region
      %39 = dma.done [#allocation6], 128
    $region17: #{tpu_custom_call.1} parent=1 // pred_fallthru
      _
    %v40 = vld [vmem:[#allocation2] sm:$0xff]
    %v41 = vld [vmem:[#allocation2 + $0x8] sm:$0xff]
    %v42 = vld [vmem:[#allocation5] sm:$0xff]
    %v44 = vperm.slane %v42, 0
    %v45 = vperm.slane %v42, 1
    %v46 = vperm.slane %v42, 2
    %v47 = vperm.slane %v42, 3
    %v48 = vperm.slane %v42, 4
    %v49 = vperm.slane %v42, 5
    %v50 = vperm.slane %v42, 6
    %v51 = vperm.slane %v42, 7
    %v52 = vrot.slane %v45, 6
    %v53 = vrot.slane %v46, 4
    %v54 = vrot.slane %v47, 2
    %v55 = vrot.slane %v49, 6
    %v56 = vrot.slane %v50, 4
    %v57 = vrot.slane %v51, 2
    %vm58 = vcmask 1041408
    %v59 = vsel %vm58, %v44, %v52
    %vm60 = vcmask 1045508
    %v61 = vsel %vm60, %v53, %v54
    %vm62 = vcmask 1043456
    %v63 = vsel %vm62, %v59, %v61
    %v64 = vsel %vm58, %v48, %v55
    %v65 = vsel %vm60, %v56, %v57
    %v66 = vsel %vm62, %v64, %v65
    %v69 = vadd.f32 %v40, %v63
    %v70 = vadd.f32 %v41, %v66
    %71 = vst [vmem:[#allocation7] sm:$0xff] %v69
    %72 = vst [vmem:[#allocation7 + $0x8] sm:$0xff] %v70
    // Predicated region
    $region18: #{tpu_custom_call.1} parent=1 // pred_check
      _
    $region19: #{tpu_custom_call.1} parent=1 // pred_check_branch
      %74 = sbr.rel (0) target = $region21
    $region20: #{tpu_custom_call.1} parent=1 // pred_region
      %76 = vsyncadd [#allocation4], 0
      %s78 = sshll.u32 [#allocation7], 4
      %s79 = int_to_ptr.vmem [resolvable:$true] %s78
      %s80 = sshll.u32 %s2, 4
      %s81 = int_to_ptr.hbm [resolvable:$true] %s80
      %83 = dma.vmem_to_hbm [thread:$0]  %s79, 256, %s81, [#allocation4]
    $region21: #{tpu_custom_call.1} parent=1 // pred_fallthru
      _
    // Predicated region
    $region22: #{tpu_custom_call.1} parent=1 // pred_check
      _
    $region23: #{tpu_custom_call.1} parent=1 // pred_check_branch
      %85 = sbr.rel (0) target = $region25
    $region24: #{tpu_custom_call.1} parent=1 // pred_region
      %87 = dma.done [#allocation4], 256
    $region25: #{tpu_custom_call.1} parent=1 // pred_fallthru
      _
    %88 = vsyncpa [#allocation3], 1
    %89 = vsyncpa [#allocation6], 1
    %90 = vsyncpa [#allocation4], 1

</llo_original>
